<compile_context>
chip_gen: v5e
topology: v5e:2x2
jax: 0.10.0
libtpu: 0.0.40
codegen_flags: <defaults>
</compile_context>

<pallas_src>
import functools

import jax
import jax.numpy as jnp
from jax.experimental import pallas as pl
from jax.experimental.pallas import tpu as pltpu


def _round_up(x, m):
    return (x + m - 1) // m * m


def _cdiv(a, b):
    return -(-a // b)


def _device_kind():
    try:
        return jax.devices()[0].device_kind.lower()
    except Exception:
        return ""


def _idm_kernel(x_ref, wfc_ref, bfc_ref, wcls_ref, bcls_ref, out_ref, *, bf16_act):
    # x_ref:    [TILE_N, H] f32       wfc_ref:  [H, H]   bf16  (W_fc^T)
    # bfc_ref:  [1, H]      f32       wcls_ref: [H, 128] bf16  (W_cls^T, cols 2.. zero)
    # bcls_ref: [1, 128]    f32       out_ref:  [TILE_N, 2] f32
    xb = x_ref[...].astype(jnp.bfloat16)                       # in-kernel cast (VPU)
    pre = jnp.dot(xb, wfc_ref[...],
                  preferred_element_type=jnp.float32) + bfc_ref[...]
    if bf16_act:                                               # v6e/v7x: bf16 EUP
        hidden = jnp.tanh(pre.astype(jnp.bfloat16))
    else:                                                      # v5e: f32 EUP only
        hidden = jnp.tanh(pre).astype(jnp.bfloat16)
    logits = jnp.dot(hidden, wcls_ref[...],
                     preferred_element_type=jnp.float32) + bcls_ref[...]
    out_ref[...] = logits[:, :2]                               # lane-narrow store


def _pick_row_tile(n, h, tile_n, is_v7x):
    """Row tile: big (amortize ~0.35us/grid step), 8-aligned, VMEM-budgeted,
    cdiv-balanced so worst-case row padding is < 8 rows per tile."""
    # Per-row VMEM bytes: double-buffered f32 x tile + bf16 copy + f32 pre/hidden
    # + f32 logits row + double-buffered narrow out rows.
    per_row = 2 * h * 4 + h * (2 + 4 + 2) + 128 * 4 + 2 * 2 * 4
    budget = 24 * 1024 * 1024
    cap = max(8, (budget // per_row) // 8 * 8)
    tile = max(8, min(tile_n, cap))
    num_tiles = _cdiv(n, tile)
    if is_v7x:
        # 2 TensorCores/chip: keep the "parallel" row axis evenly splittable.
        if num_tiles == 1 and n > 16:
            num_tiles = 2
        elif num_tiles > 1 and num_tiles % 2 == 1:
            num_tiles += 1
    tn = _round_up(_cdiv(n, num_tiles), 8)
    n_pad = _round_up(n, tn)
    return tn, n_pad


def _apply_idm_2d(x2d, wfc_t, bfc_row, wcls_t, bcls_row, *,
                  tile_n, bf16_act, is_v7x):
    """fc -> tanh -> classifier on a row-major [N, H] f32 matrix. Returns [N, 2] f32."""
    n, h = x2d.shape
    tn, n_pad = _pick_row_tile(n, h, tile_n, is_v7x)
    if n_pad != n:  # rows only; H is never padded (x block last dim == full dim)
        x2d = jnp.pad(x2d, ((0, n_pad - n), (0, 0)))
    grid = (n_pad // tn,)

    kernel = functools.partial(_idm_kernel, bf16_act=bf16_act)

    cost = pl.CostEstimate(
        flops=2 * n_pad * h * (h + 128),
        transcendentals=n_pad * h,
        bytes_accessed=(n_pad * h * 4              # x (f32, read once)
                        + h * h * 2 + h * 4        # W_fc^T + b_fc (resident)
                        + h * 128 * 2 + 128 * 4    # W_cls^T + b_cls (resident)
                        + n_pad * 2 * 4),          # narrow logits writeback
    )

    weight_bytes = h * h * 2 + h * 4 + h * 128 * 2 + 128 * 4
    tile_bytes = 2 * tn * h * 4 + 2 * tn * 2 * 4          # dbl-buffered x / out tiles
    temp_bytes = tn * h * (2 + 4 + 2) + tn * 128 * 4      # in-kernel temporaries
    # Upper bound: count weights twice so the declared limit is never an
    # under-estimate even if single buffering is not honoured.
    vmem_est = 2 * weight_bytes + tile_bytes + temp_bytes
    vmem_cap = (60 if is_v7x else 110) * 1024 * 1024
    vmem_limit = int(min(max(int(1.3 * vmem_est), 16 * 1024 * 1024), vmem_cap))

    def build(single_buffer_weights):
        wkw = ({"pipeline_mode": pl.Buffered(1)} if single_buffer_weights else {})
        return pl.pallas_call(
            kernel,
            out_shape=jax.ShapeDtypeStruct((n_pad, 2), jnp.float32),
            grid_spec=pltpu.PrefetchScalarGridSpec(
                num_scalar_prefetch=0,
                grid=grid,
                in_specs=[
                    pl.BlockSpec((tn, h), lambda i: (i, 0)),           # x row tile
                    pl.BlockSpec((h, h), lambda i: (0, 0), **wkw),     # W_fc^T resident
                    pl.BlockSpec((1, h), lambda i: (0, 0), **wkw),     # b_fc resident
                    pl.BlockSpec((h, 128), lambda i: (0, 0), **wkw),   # W_cls^T resident
                    pl.BlockSpec((1, 128), lambda i: (0, 0), **wkw),   # b_cls resident
                ],
                out_specs=pl.BlockSpec((tn, 2), lambda i: (i, 0)),
            ),
            compiler_params=pltpu.CompilerParams(
                dimension_semantics=("parallel",),
                vmem_limit_bytes=vmem_limit,
            ),
            cost_estimate=cost,
        )

    try:
        out = build(True)(x2d, wfc_t, bfc_row, wcls_t, bcls_row)
        out = jax.block_until_ready(out)  # surface compile/runtime errors here
    except Exception:
        # Installed JAX rejected pipeline_mode / single buffering: fall back to
        # default double-buffered resident weights (correct, just more VMEM).
        out = build(False)(x2d, wfc_t, bfc_row, wcls_t, bcls_row)
    return out[:n]


def prepare_idm_params(w_fc, b_fc, w_cls, b_cls):
    """One-time weight prep (transpose + bf16 cast + pad classifier to 128 lanes).
    Hoisted out of the forward path: call once, reuse across forward calls."""
    h = w_fc.shape[1]
    wfc_t = jnp.asarray(w_fc, jnp.float32).T.astype(jnp.bfloat16)          # [H, H]
    bfc_row = jnp.asarray(b_fc, jnp.float32).reshape(1, h)                 # [1, H]
    wcls_t = jnp.zeros((h, 128), jnp.bfloat16).at[:, :2].set(
        jnp.asarray(w_cls, jnp.float32).T.astype(jnp.bfloat16))            # [H, 128]
    bcls_row = jnp.zeros((1, 128), jnp.float32).at[0, :2].set(
        jnp.asarray(b_cls, jnp.float32))                                   # [1, 128]
    return wfc_t, bfc_row, wcls_t, bcls_row


def information_decoupling_forward(context_vector, question_vector, prepared_params,
                                   *, tile_n=None):
    """JAX wrapper reproducing InformationDecouplingModule.forward.

    context_vector:  [B, T_ctx, H] f32
    question_vector: [B, T_q,  H] f32
    prepared_params: output of prepare_idm_params (reusable across calls)
    returns logits:  [B, T_ctx + T_q, 2] f32
    """
    wfc_t, bfc_row, wcls_t, bcls_row = prepared_params
    h = wfc_t.shape[0]
    b, t_ctx, _ = context_vector.shape
    _, t_q, _ = question_vector.shape

    kind = _device_kind()
    is_v7x = ("v7" in kind) or ("7x" in kind)
    bf16_act = is_v7x or ("v6" in kind)
    if tile_n is None:
        tile_n = 1024 if is_v7x else 2048  # 64 MiB VMEM on v7x vs 128 MiB on v5e/v6e

    def run(x2d):
        return _apply_idm_2d(x2d, wfc_t, bfc_row, wcls_t, bcls_row,
                             tile_n=tile_n, bf16_act=bf16_act, is_v7x=is_v7x)

    n_ctx, n_q = b * t_ctx, b * t_q
    if min(n_ctx, n_q) < h:
        # Small-N (weight-fetch-dominated) regime: one pallas_call over the
        # concatenated rows so the resident W_fc is DMA'd from HBM only once.
        combined = jnp.concatenate([context_vector, question_vector], axis=1)
        out2d = run(combined.reshape(n_ctx + n_q, h))
        return out2d.reshape(b, t_ctx + t_q, 2)
    # Large-N regime: the op is per-row, so avoid materializing the concatenated
    # [B, T_ctx+T_q, H] activation; only the tiny logits are concatenated.
    ctx = run(context_vector.reshape(n_ctx, h)).reshape(b, t_ctx, 2)
    q = run(question_vector.reshape(n_q, h)).reshape(b, t_q, 2)
    return jnp.concatenate([ctx, q], axis=1)


def init_params(hidden_size, key):
    """Deterministic parameter init (same shapes as nn.Linear in __init__)."""
    k1, k2, k3, k4 = jax.random.split(key, 4)
    bound = 1.0 / (hidden_size ** 0.5)
    w_fc = jax.random.uniform(k1, (hidden_size, hidden_size),
                              minval=-bound, maxval=bound, dtype=jnp.float32)
    b_fc = jax.random.uniform(k2, (hidden_size,),
                              minval=-bound, maxval=bound, dtype=jnp.float32)
    w_cls = jax.random.uniform(k3, (2, hidden_size),
                               minval=-bound, maxval=bound, dtype=jnp.float32)
    b_cls = jax.random.uniform(k4, (2,),
                               minval=-bound, maxval=bound, dtype=jnp.float32)
    return w_fc, b_fc, w_cls, b_cls


if __name__ == "__main__":
    key = jax.random.PRNGKey(0)
    k_ctx, k_q, k_params = jax.random.split(key, 3)

    batch, seq_ctx, seq_q, hidden = 2, 8, 8, 32

    context_vector = jax.random.normal(
        k_ctx, (batch, seq_ctx, hidden), dtype=jnp.float32)
    question_vector = jax.random.normal(
        k_q, (batch, seq_q, hidden), dtype=jnp.float32)

    params = init_params(hidden, k_params)
    prepared = prepare_idm_params(*params)   # one-time weight prep (reused per call)

    logits = information_decoupling_forward(
        context_vector, question_vector, prepared)
    logits = jax.block_until_ready(logits)

    # Pure-JAX f32 reference. The kernel uses bf16 matmuls with f32 accumulation,
    # hence the relaxed tolerance.
    w_fc, b_fc, w_cls, b_cls = params
    combined = jnp.concatenate([context_vector, question_vector], axis=1)
    ref = jnp.tanh(combined @ w_fc.T + b_fc) @ w_cls.T + b_cls

    assert logits.shape == (batch, seq_ctx + seq_q, 2)
    assert bool(jnp.all(jnp.isfinite(logits)))
    max_err = float(jnp.max(jnp.abs(logits - ref)))
    assert jnp.allclose(logits, ref, atol=5e-2, rtol=5e-2), max_err

    print("KERNEL_OK")
</pallas_src>

<mosaic_0001>
module attributes {stable_mosaic.version = 11 : i64} {
  func.func @_idm_kernel(%arg0: i32, %arg1: memref<32x32xf32, #tpu.memory_space<vmem>>, %arg2: memref<32x32xbf16, #tpu.memory_space<vmem>>, %arg3: memref<1x32xf32, #tpu.memory_space<vmem>>, %arg4: memref<32x128xbf16, #tpu.memory_space<vmem>>, %arg5: memref<1x128xf32, #tpu.memory_space<vmem>>, %arg6: memref<32x2xf32, #tpu.memory_space<vmem>>) attributes {dimension_semantics = [#tpu.dimension_semantics<parallel>], iteration_bounds = array<i64: 1>, scalar_prefetch = 0 : i64, scratch_operands = 0 : i64, tpu.core_type = #tpu.core_type<tc>, window_params = [{transform_indices = @transform_0, window_bounds = array<i64: 32, 32>}, {pipeline_mode = #tpu.pipeline_mode<synchronous>, transform_indices = @transform_1, window_bounds = array<i64: 32, 32>}, {pipeline_mode = #tpu.pipeline_mode<synchronous>, transform_indices = @transform_2, window_bounds = array<i64: 1, 32>}, {pipeline_mode = #tpu.pipeline_mode<synchronous>, transform_indices = @transform_3, window_bounds = array<i64: 32, 128>}, {pipeline_mode = #tpu.pipeline_mode<synchronous>, transform_indices = @transform_4, window_bounds = array<i64: 1, 128>}, {transform_indices = @transform_5, window_bounds = array<i64: 32, 2>}]} {
    %c0 = arith.constant 0 : index
    %c0_0 = arith.constant 0 : index
    %0 = vector.load %arg1[%c0, %c0_0] : memref<32x32xf32, #tpu.memory_space<vmem>>, vector<32x32xf32>
    %1 = arith.truncf %0 : vector<32x32xf32> to vector<32x32xbf16>
    %c0_1 = arith.constant 0 : index
    %c0_2 = arith.constant 0 : index
    %2 = vector.load %arg2[%c0_1, %c0_2] : memref<32x32xbf16, #tpu.memory_space<vmem>>, vector<32x32xbf16>
    %cst = arith.constant dense<0.000000e+00> : vector<32x32xf32>
    %3 = tpu.matmul %1, %2, %cst {dimension_numbers = #tpu.dot_dimension_numbers<[1], [0], [0], [1], [0, 0, 1, 1], [], []>} : vector<32x32xbf16>, vector<32x32xbf16>, vector<32x32xf32> -> vector<32x32xf32>
    %c0_3 = arith.constant 0 : index
    %c0_4 = arith.constant 0 : index
    %4 = vector.load %arg3[%c0_3, %c0_4] : memref<1x32xf32, #tpu.memory_space<vmem>>, vector<1x32xf32>
    %5 = vector.broadcast %4 : vector<1x32xf32> to vector<32x32xf32>
    %6 = arith.addf %3, %5 : vector<32x32xf32>
    %7 = math.tanh %6 : vector<32x32xf32>
    %8 = arith.truncf %7 : vector<32x32xf32> to vector<32x32xbf16>
    %c0_5 = arith.constant 0 : index
    %c0_6 = arith.constant 0 : index
    %9 = vector.load %arg4[%c0_5, %c0_6] : memref<32x128xbf16, #tpu.memory_space<vmem>>, vector<32x128xbf16>
    %cst_7 = arith.constant dense<0.000000e+00> : vector<32x128xf32>
    %10 = tpu.matmul %8, %9, %cst_7 {dimension_numbers = #tpu.dot_dimension_numbers<[1], [0], [0], [1], [0, 0, 1, 1], [], []>} : vector<32x32xbf16>, vector<32x128xbf16>, vector<32x128xf32> -> vector<32x128xf32>
    %c0_8 = arith.constant 0 : index
    %c0_9 = arith.constant 0 : index
    %11 = vector.load %arg5[%c0_8, %c0_9] : memref<1x128xf32, #tpu.memory_space<vmem>>, vector<1x128xf32>
    %12 = vector.broadcast %11 : vector<1x128xf32> to vector<32x128xf32>
    %13 = arith.addf %10, %12 : vector<32x128xf32>
    %14 = vector.extract_strided_slice %13 {offsets = [0, 0], sizes = [32, 2], strides = [1, 1]} : vector<32x128xf32> to vector<32x2xf32>
    %c0_10 = arith.constant 0 : index
    %c0_11 = arith.constant 0 : index
    %15 = vector.load %arg6[%c0_10, %c0_11] : memref<32x2xf32, #tpu.memory_space<vmem>>, vector<32x2xf32>
    tpu.vector_store %arg6[%c0_10, %c0_11], %14 {strides = array<i32>} : memref<32x2xf32, #tpu.memory_space<vmem>>, vector<32x2xf32>,
    return
  }
  func.func @transform_0(%arg0: i32) -> (i32, i32) {
    %c0_i32 = arith.constant 0 : i32
    %c0_i32_0 = arith.constant 0 : i32
    return %arg0, %c0_i32 : i32, i32
  }
  func.func @transform_1(%arg0: i32) -> (i32, i32) {
    %c0_i32 = arith.constant 0 : i32
    %c0_i32_0 = arith.constant 0 : i32
    %c0_i32_1 = arith.constant 0 : i32
    return %c0_i32, %c0_i32_0 : i32, i32
  }
  func.func @transform_2(%arg0: i32) -> (i32, i32) {
    %c0_i32 = arith.constant 0 : i32
    %c0_i32_0 = arith.constant 0 : i32
    %c0_i32_1 = arith.constant 0 : i32
    return %c0_i32, %c0_i32_0 : i32, i32
  }
  func.func @transform_3(%arg0: i32) -> (i32, i32) {
    %c0_i32 = arith.constant 0 : i32
    %c0_i32_0 = arith.constant 0 : i32
    %c0_i32_1 = arith.constant 0 : i32
    return %c0_i32, %c0_i32_0 : i32, i32
  }
  func.func @transform_4(%arg0: i32) -> (i32, i32) {
    %c0_i32 = arith.constant 0 : i32
    %c0_i32_0 = arith.constant 0 : i32
    %c0_i32_1 = arith.constant 0 : i32
    return %c0_i32, %c0_i32_0 : i32, i32
  }
  func.func @transform_5(%arg0: i32) -> (i32, i32) {
    %c0_i32 = arith.constant 0 : i32
    %c0_i32_0 = arith.constant 0 : i32
    return %arg0, %c0_i32 : i32, i32
  }
}

module attributes {stable_mosaic.version = 11 : i64} {
  func.func @_idm_kernel(%arg0: i32, %arg1: memref<32x32xf32, #tpu.memory_space<vmem>>, %arg2: memref<32x32xbf16, #tpu.memory_space<vmem>>, %arg3: memref<1x32xf32, #tpu.memory_space<vmem>>, %arg4: memref<32x128xbf16, #tpu.memory_space<vmem>>, %arg5: memref<1x128xf32, #tpu.memory_space<vmem>>, %arg6: memref<32x2xf32, #tpu.memory_space<vmem>>) attributes {dimension_semantics = [#tpu.dimension_semantics<parallel>], iteration_bounds = array<i64: 1>, scalar_prefetch = 0 : i64, scratch_operands = 0 : i64, tpu.core_type = #tpu.core_type<tc>, window_params = [{transform_indices = @transform_0, window_bounds = array<i64: 32, 32>}, {pipeline_mode = #tpu.pipeline_mode<synchronous>, transform_indices = @transform_1, window_bounds = array<i64: 32, 32>}, {pipeline_mode = #tpu.pipeline_mode<synchronous>, transform_indices = @transform_2, window_bounds = array<i64: 1, 32>}, {pipeline_mode = #tpu.pipeline_mode<synchronous>, transform_indices = @transform_3, window_bounds = array<i64: 32, 128>}, {pipeline_mode = #tpu.pipeline_mode<synchronous>, transform_indices = @transform_4, window_bounds = array<i64: 1, 128>}, {transform_indices = @transform_5, window_bounds = array<i64: 32, 2>}]} {
    %c0 = arith.constant 0 : index
    %c0_0 = arith.constant 0 : index
    %0 = vector.load %arg1[%c0, %c0_0] : memref<32x32xf32, #tpu.memory_space<vmem>>, vector<32x32xf32>
    %1 = arith.truncf %0 : vector<32x32xf32> to vector<32x32xbf16>
    %c0_1 = arith.constant 0 : index
    %c0_2 = arith.constant 0 : index
    %2 = vector.load %arg2[%c0_1, %c0_2] : memref<32x32xbf16, #tpu.memory_space<vmem>>, vector<32x32xbf16>
    %cst = arith.constant dense<0.000000e+00> : vector<32x32xf32>
    %3 = tpu.matmul %1, %2, %cst {dimension_numbers = #tpu.dot_dimension_numbers<[1], [0], [0], [1], [0, 0, 1, 1], [], []>} : vector<32x32xbf16>, vector<32x32xbf16>, vector<32x32xf32> -> vector<32x32xf32>
    %c0_3 = arith.constant 0 : index
    %c0_4 = arith.constant 0 : index
    %4 = vector.load %arg3[%c0_3, %c0_4] : memref<1x32xf32, #tpu.memory_space<vmem>>, vector<1x32xf32>
    %5 = vector.broadcast %4 : vector<1x32xf32> to vector<32x32xf32>
    %6 = arith.addf %3, %5 : vector<32x32xf32>
    %7 = math.tanh %6 : vector<32x32xf32>
    %8 = arith.truncf %7 : vector<32x32xf32> to vector<32x32xbf16>
    %c0_5 = arith.constant 0 : index
    %c0_6 = arith.constant 0 : index
    %9 = vector.load %arg4[%c0_5, %c0_6] : memref<32x128xbf16, #tpu.memory_space<vmem>>, vector<32x128xbf16>
    %cst_7 = arith.constant dense<0.000000e+00> : vector<32x128xf32>
    %10 = tpu.matmul %8, %9, %cst_7 {dimension_numbers = #tpu.dot_dimension_numbers<[1], [0], [0], [1], [0, 0, 1, 1], [], []>} : vector<32x32xbf16>, vector<32x128xbf16>, vector<32x128xf32> -> vector<32x128xf32>
    %c0_8 = arith.constant 0 : index
    %c0_9 = arith.constant 0 : index
    %11 = vector.load %arg5[%c0_8, %c0_9] : memref<1x128xf32, #tpu.memory_space<vmem>>, vector<1x128xf32>
    %12 = vector.broadcast %11 : vector<1x128xf32> to vector<32x128xf32>
    %13 = arith.addf %10, %12 : vector<32x128xf32>
    %14 = vector.extract_strided_slice %13 {offsets = [0, 0], sizes = [32, 2], strides = [1, 1]} : vector<32x128xf32> to vector<32x2xf32>
    %c0_10 = arith.constant 0 : index
    %c0_11 = arith.constant 0 : index
    %15 = vector.load %arg6[%c0_10, %c0_11] : memref<32x2xf32, #tpu.memory_space<vmem>>, vector<32x2xf32>
    tpu.vector_store %arg6[%c0_10, %c0_11], %14 {strides = array<i32>} : memref<32x2xf32, #tpu.memory_space<vmem>>, vector<32x2xf32>,
    return
  }
  func.func @transform_0(%arg0: i32) -> (i32, i32) {
    %c0_i32 = arith.constant 0 : i32
    %c0_i32_0 = arith.constant 0 : i32
    return %arg0, %c0_i32 : i32, i32
  }
  func.func @transform_1(%arg0: i32) -> (i32, i32) {
    %c0_i32 = arith.constant 0 : i32
    %c0_i32_0 = arith.constant 0 : i32
    %c0_i32_1 = arith.constant 0 : i32
    return %c0_i32, %c0_i32_0 : i32, i32
  }
  func.func @transform_2(%arg0: i32) -> (i32, i32) {
    %c0_i32 = arith.constant 0 : i32
    %c0_i32_0 = arith.constant 0 : i32
    %c0_i32_1 = arith.constant 0 : i32
    return %c0_i32, %c0_i32_0 : i32, i32
  }
  func.func @transform_3(%arg0: i32) -> (i32, i32) {
    %c0_i32 = arith.constant 0 : i32
    %c0_i32_0 = arith.constant 0 : i32
    %c0_i32_1 = arith.constant 0 : i32
    return %c0_i32, %c0_i32_0 : i32, i32
  }
  func.func @transform_4(%arg0: i32) -> (i32, i32) {
    %c0_i32 = arith.constant 0 : i32
    %c0_i32_0 = arith.constant 0 : i32
    %c0_i32_1 = arith.constant 0 : i32
    return %c0_i32, %c0_i32_0 : i32, i32
  }
  func.func @transform_5(%arg0: i32) -> (i32, i32) {
    %c0_i32 = arith.constant 0 : i32
    %c0_i32_0 = arith.constant 0 : i32
    return %arg0, %c0_i32 : i32, i32
  }
}

</mosaic_0001>

<llo_original>
// kernel: tpu_custom_call.1
$region0: #{tpu_custom_call.1}
  #allocation0 [shape = 'u32[]', space=smem, size = 0x4, offset = 0x4, fixed_abs, tag = 'smem constant byte address 0x4 - core index']
  #allocation1 [shape = 'u32[72,128]{1,0:T(1,128)}', space=vmem, size = 0x9000, scoped, tag = 'internal scratch']
  %s0 = inlined_call_operand.hbm [shape: f32[32,32], index: 0, kind: input, shape index: {}]
  %s1 = inlined_call_operand.hbm [shape: bf16[32,32], index: 1, kind: input, shape index: {}]
  %s2 = inlined_call_operand.vmem [shape: f32[1,32], index: 2, kind: input, shape index: {}]
  %s3 = inlined_call_operand.hbm [shape: bf16[32,128], index: 3, kind: input, shape index: {}]
  %s4 = inlined_call_operand.vmem [shape: f32[1,128], index: 4, kind: input, shape index: {}]
  %s5 = inlined_call_operand.vmem [shape: f32[32,2], index: 5, kind: output, shape index: {}]
  %s6 = sld [smem:[#allocation0]]
  $region42: #{tpu_custom_call.1} parent=0
    _
  %s8 = ssub.s32 1, %s6
  %s9 = scalar_select 0, %s8, %s6
  $region1: #{tpu_custom_call.1} parent=0
    #allocation2 [shape = 'u8[16384]{0}', space=vmem, size = 0x4000, scoped, tag = 'input window, operand 0, single buffered']
    #allocation3 [shape = 's32[1]{0}', space=sflag, size = 0x4, scoped, tag = 'scoped memory for tpu_custom_call.1']
    #allocation4 [shape = 'u8[8192]{0}', space=vmem, size = 0x2000, scoped, tag = 'input window, operand 1, single buffered']
    #allocation5 [shape = 's32[1]{0}', space=sflag, size = 0x4, scoped, tag = 'scoped memory for tpu_custom_call.1']
    #allocation6 [shape = 'u8[8192]{0}', space=vmem, size = 0x2000, scoped, tag = 'input window, operand 3, single buffered']
    %10 = vsyncpa [#allocation3], 0
    %11 = vsyncpa [#allocation5], 0
    // Predicated region
    $region2: #{tpu_custom_call.1} parent=1 // pred_check
      _
    $region3: #{tpu_custom_call.1} parent=1 // pred_check_branch
      %13 = sbr.rel (0) target = $region5
    $region4: #{tpu_custom_call.1} parent=1 // pred_region
      %15 = vsyncadd [#allocation3], 0
      %s16 = sshll.u32 %s0, 4
      %s17 = int_to_ptr.hbm [resolvable:$true] %s16
      %s18 = sshll.u32 [#allocation2], 4
      %s19 = int_to_ptr.vmem [resolvable:$true] %s18
      %24 = dma.hbm_to_vmem [thread:$0]  %s17, 512, %s19, [#allocation3], 128, 128, 8
    $region5: #{tpu_custom_call.1} parent=1 // pred_fallthru
      _
    // Predicated region
    $region6: #{tpu_custom_call.1} parent=1 // pred_check
      _
    $region7: #{tpu_custom_call.1} parent=1 // pred_check_branch
      %26 = sbr.rel (0) target = $region9
    $region8: #{tpu_custom_call.1} parent=1 // pred_region
      %28 = vsyncadd [#allocation5], 0
      %s29 = sshll.u32 %s1, 4
      %s30 = int_to_ptr.hbm [resolvable:$true] %s29
      %s31 = sshll.u32 [#allocation4], 4
      %s32 = int_to_ptr.vmem [resolvable:$true] %s31
      %37 = dma.hbm_to_vmem [thread:$0]  %s30, 256, %s32, [#allocation5], 64, 64, 4
    $region9: #{tpu_custom_call.1} parent=1 // pred_fallthru
      _
    // Predicated region
    $region10: #{tpu_custom_call.1} parent=1 // pred_check
      _
    $region11: #{tpu_custom_call.1} parent=1 // pred_check_branch
      %39 = sbr.rel (0) target = $region13
    $region12: #{tpu_custom_call.1} parent=1 // pred_region
      _
    $region13: #{tpu_custom_call.1} parent=1 // pred_fallthru
      _
    // Predicated region
    $region14: #{tpu_custom_call.1} parent=1 // pred_check
      _
    $region15: #{tpu_custom_call.1} parent=1 // pred_check_branch
      %41 = sbr.rel (0) target = $region17
    $region16: #{tpu_custom_call.1} parent=1 // pred_region
      %43 = vsyncadd [#allocation5], 0
      %s44 = sshll.u32 %s3, 4
      %s45 = int_to_ptr.hbm [resolvable:$true] %s44
      %s46 = sshll.u32 [#allocation6], 4
      %s47 = int_to_ptr.vmem [resolvable:$true] %s46
      %52 = dma.hbm_to_vmem [thread:$0]  %s45, 256, %s47, [#allocation5], 64, 64, 4
    $region17: #{tpu_custom_call.1} parent=1 // pred_fallthru
      _
    // Predicated region
    $region18: #{tpu_custom_call.1} parent=1 // pred_check
      _
    $region19: #{tpu_custom_call.1} parent=1 // pred_check_branch
      %54 = sbr.rel (0) target = $region21
    $region20: #{tpu_custom_call.1} parent=1 // pred_region
      _
    $region21: #{tpu_custom_call.1} parent=1 // pred_fallthru
      _
    // Predicated region
    $region22: #{tpu_custom_call.1} parent=1 // pred_check
      _
    $region23: #{tpu_custom_call.1} parent=1 // pred_check_branch
      %56 = sbr.rel (0) target = $region25
    $region24: #{tpu_custom_call.1} parent=1 // pred_region
      %58 = dma.done [#allocation3], 512
    $region25: #{tpu_custom_call.1} parent=1 // pred_fallthru
      _
    // Predicated region
    $region26: #{tpu_custom_call.1} parent=1 // pred_check
      _
    $region27: #{tpu_custom_call.1} parent=1 // pred_check_branch
      %60 = sbr.rel (0) target = $region29
    $region28: #{tpu_custom_call.1} parent=1 // pred_region
      %62 = dma.done [#allocation5], 256
    $region29: #{tpu_custom_call.1} parent=1 // pred_fallthru
      _
    // Predicated region
    $region30: #{tpu_custom_call.1} parent=1 // pred_check
      _
    $region31: #{tpu_custom_call.1} parent=1 // pred_check_branch
      %64 = sbr.rel (0) target = $region33
    $region32: #{tpu_custom_call.1} parent=1 // pred_region
      %66 = dma.done [#allocation5], 256
    $region33: #{tpu_custom_call.1} parent=1 // pred_fallthru
      _
    %v68 = vld [vmem:[#allocation2] sm:$0xff]
    %v69 = vld [vmem:[#allocation2 + $0x8] sm:$0xff]
    %v70 = vld [vmem:[#allocation2 + $0x10] sm:$0xff]
    %v71 = vld [vmem:[#allocation2 + $0x18] sm:$0xff]
    %v72 = vpack.c.bf16 %v69, %v68
    %v73 = vpack.c.bf16 %v71, %v70
    %v74 = vld [vmem:[#allocation4] sm:$0xf]
    %v75 = vld [vmem:[#allocation4 + $0x4] sm:$0xf]
    %v76 = vld [vmem:[#allocation4 + $0x8] sm:$0xf]
    %v77 = vld [vmem:[#allocation4 + $0xc] sm:$0xf]
    %v78 = vld [vmem:[%s2] sm:$0x1]
    %v80 = vperm.slane %v78, 0
    %v86 = vunpack.c.l.b16 %v74
    %v87 = vunpack.c.l.b16 %v75
    %v88 = vunpack.c.l.b16 %v76
    %v89 = vunpack.c.l.b16 %v77
    %v90 = vpack.c.b16 %v87, %v86
    %v91 = vpack.c.b16 %v89, %v88
    %vm94 = vcmask 261120
    %v96 = vsel %vm94, %v72, 0
    %v99 = vsel %vm94, %v73, 0
    %101 = vmatpush.bf16.msra.mxu0 0
    %102 = vmatpush.bf16.msra.mxu0 0
    %103 = vmatpush.bf16.msra.mxu0 0
    %104 = vmatpush.bf16.msra.mxu0 0
    %105 = vmatpush.bf16.msra.mxu0 0
    %106 = vmatpush.bf16.msra.mxu0 0
    %107 = vmatpush.bf16.msra.mxu0 %v91
    %108 = vmatpush.bf16.msra.mxu0 %v90
    %109 = vmatmul.bf16.gmra.mxu0 %v96
    %v110 = vpop.f32.mrf.mxu0
    %v111 = vadd.f32 %v80, %v110
    %v112 = vpop.f32.mrf.mxu0
    %v113 = vadd.f32 %v80, %v112
    %114 = vmatmul.bf16.gmra.mxu0 %v99
    %v115 = vpop.f32.mrf.mxu0
    %v116 = vadd.f32 %v80, %v115
    %v117 = vpop.f32.mrf.mxu0
    %v118 = vadd.f32 %v80, %v117
    %119 = vdwg.mxu0
    %v120 = vtanh.pop %v111
    %v121 = vtanh.pop %v113
    %v122 = vtanh.pop %v116
    %v123 = vtanh.pop %v118
    %v124 = vpack.c.bf16 %v121, %v120
    %v125 = vpack.c.bf16 %v123, %v122
    %v126 = vld [vmem:[#allocation6] sm:$0xf]
    %v127 = vld [vmem:[#allocation6 + $0x4] sm:$0xf]
    %v128 = vld [vmem:[#allocation6 + $0x8] sm:$0xf]
    %v129 = vld [vmem:[#allocation6 + $0xc] sm:$0xf]
    %v130 = vld [vmem:[%s4] sm:$0x1]
    %v132 = vperm.slane %v130, 0
    %v138 = vunpack.c.l.b16 %v126
    %v139 = vunpack.c.l.b16 %v127
    %v140 = vunpack.c.l.b16 %v128
    %v141 = vunpack.c.l.b16 %v129
    %v142 = vpack.c.b16 %v139, %v138
    %v143 = vpack.c.b16 %v141, %v140
    %v147 = vsel %vm94, %v124, 0
    %v150 = vsel %vm94, %v125, 0
    %152 = vmatpush.bf16.msra.mxu0 0
    %153 = vmatpush.bf16.msra.mxu0 0
    %154 = vmatpush.bf16.msra.mxu0 0
    %155 = vmatpush.bf16.msra.mxu0 0
    %156 = vmatpush.bf16.msra.mxu0 0
    %157 = vmatpush.bf16.msra.mxu0 0
    %158 = vmatpush.bf16.msra.mxu0 %v143
    %159 = vmatpush.bf16.msra.mxu0 %v142
    %160 = vmatmul.bf16.gmra.mxu0 %v147
    %v161 = vpop.f32.mrf.mxu0
    %v162 = vadd.f32 %v132, %v161
    %v163 = vpop.f32.mrf.mxu0
    %v164 = vadd.f32 %v132, %v163
    %165 = vmatmul.bf16.gmra.mxu0 %v150
    %v166 = vpop.f32.mrf.mxu0
    %v167 = vadd.f32 %v132, %v166
    %v168 = vpop.f32.mrf.mxu0
    %v169 = vadd.f32 %v132, %v168
    %170 = vdwg.mxu0
    %vm171 = vcmask 15360
    %172 = vst.msk [vmem:[%s5] sm:$0xff] %vm171, %v162
    %173 = vst.msk [vmem:[%s5 + $0x8] sm:$0xff] %vm171, %v164
    %174 = vst.msk [vmem:[%s5 + $0x10] sm:$0xff] %vm171, %v167
    %175 = vst.msk [vmem:[%s5 + $0x18] sm:$0xff] %vm171, %v169
    // Predicated region
    $region34: #{tpu_custom_call.1} parent=1 // pred_check
      _
    $region35: #{tpu_custom_call.1} parent=1 // pred_check_branch
      %177 = sbr.rel (0) target = $region37
    $region36: #{tpu_custom_call.1} parent=1 // pred_region
      _
    $region37: #{tpu_custom_call.1} parent=1 // pred_fallthru
      _
    // Predicated region
    $region38: #{tpu_custom_call.1} parent=1 // pred_check
      _
    $region39: #{tpu_custom_call.1} parent=1 // pred_check_branch
      %179 = sbr.rel (0) target = $region41
    $region40: #{tpu_custom_call.1} parent=1 // pred_region
      _
    $region41: #{tpu_custom_call.1} parent=1 // pred_fallthru
      _
    %180 = vsyncpa [#allocation3], 1
    %181 = vsyncpa [#allocation5], 1

// kernel: tpu_custom_call.1
$region0: #{tpu_custom_call.1}
  #allocation0 [shape = 'u32[]', space=smem, size = 0x4, offset = 0x4, fixed_abs, tag = 'smem constant byte address 0x4 - core index']
  #allocation1 [shape = 'u32[72,128]{1,0:T(1,128)}', space=vmem, size = 0x9000, scoped, tag = 'internal scratch']
  %s0 = inlined_call_operand.hbm [shape: f32[32,32], index: 0, kind: input, shape index: {}]
  %s1 = inlined_call_operand.hbm [shape: bf16[32,32], index: 1, kind: input, shape index: {}]
  %s2 = inlined_call_operand.vmem [shape: f32[1,32], index: 2, kind: input, shape index: {}]
  %s3 = inlined_call_operand.hbm [shape: bf16[32,128], index: 3, kind: input, shape index: {}]
  %s4 = inlined_call_operand.vmem [shape: f32[1,128], index: 4, kind: input, shape index: {}]
  %s5 = inlined_call_operand.vmem [shape: f32[32,2], index: 5, kind: output, shape index: {}]
  %s6 = sld [smem:[#allocation0]]
  $region42: #{tpu_custom_call.1} parent=0
    _
  %s8 = ssub.s32 1, %s6
  %s9 = scalar_select 0, %s8, %s6
  $region1: #{tpu_custom_call.1} parent=0
    #allocation2 [shape = 'u8[16384]{0}', space=vmem, size = 0x4000, scoped, tag = 'input window, operand 0, single buffered']
    #allocation3 [shape = 's32[1]{0}', space=sflag, size = 0x4, scoped, tag = 'scoped memory for tpu_custom_call.1']
    #allocation4 [shape = 'u8[8192]{0}', space=vmem, size = 0x2000, scoped, tag = 'input window, operand 1, single buffered']
    #allocation5 [shape = 's32[1]{0}', space=sflag, size = 0x4, scoped, tag = 'scoped memory for tpu_custom_call.1']
    #allocation6 [shape = 'u8[8192]{0}', space=vmem, size = 0x2000, scoped, tag = 'input window, operand 3, single buffered']
    %10 = vsyncpa [#allocation3], 0
    %11 = vsyncpa [#allocation5], 0
    // Predicated region
    $region2: #{tpu_custom_call.1} parent=1 // pred_check
      _
    $region3: #{tpu_custom_call.1} parent=1 // pred_check_branch
      %13 = sbr.rel (0) target = $region5
    $region4: #{tpu_custom_call.1} parent=1 // pred_region
      %15 = vsyncadd [#allocation3], 0
      %s16 = sshll.u32 %s0, 4
      %s17 = int_to_ptr.hbm [resolvable:$true] %s16
      %s18 = sshll.u32 [#allocation2], 4
      %s19 = int_to_ptr.vmem [resolvable:$true] %s18
      %24 = dma.hbm_to_vmem [thread:$0]  %s17, 512, %s19, [#allocation3], 128, 128, 8
    $region5: #{tpu_custom_call.1} parent=1 // pred_fallthru
      _
    // Predicated region
    $region6: #{tpu_custom_call.1} parent=1 // pred_check
      _
    $region7: #{tpu_custom_call.1} parent=1 // pred_check_branch
      %26 = sbr.rel (0) target = $region9
    $region8: #{tpu_custom_call.1} parent=1 // pred_region
      %28 = vsyncadd [#allocation5], 0
      %s29 = sshll.u32 %s1, 4
      %s30 = int_to_ptr.hbm [resolvable:$true] %s29
      %s31 = sshll.u32 [#allocation4], 4
      %s32 = int_to_ptr.vmem [resolvable:$true] %s31
      %37 = dma.hbm_to_vmem [thread:$0]  %s30, 256, %s32, [#allocation5], 64, 64, 4
    $region9: #{tpu_custom_call.1} parent=1 // pred_fallthru
      _
    // Predicated region
    $region10: #{tpu_custom_call.1} parent=1 // pred_check
      _
    $region11: #{tpu_custom_call.1} parent=1 // pred_check_branch
      %39 = sbr.rel (0) target = $region13
    $region12: #{tpu_custom_call.1} parent=1 // pred_region
      _
    $region13: #{tpu_custom_call.1} parent=1 // pred_fallthru
      _
    // Predicated region
    $region14: #{tpu_custom_call.1} parent=1 // pred_check
      _
    $region15: #{tpu_custom_call.1} parent=1 // pred_check_branch
      %41 = sbr.rel (0) target = $region17
    $region16: #{tpu_custom_call.1} parent=1 // pred_region
      %43 = vsyncadd [#allocation5], 0
      %s44 = sshll.u32 %s3, 4
      %s45 = int_to_ptr.hbm [resolvable:$true] %s44
      %s46 = sshll.u32 [#allocation6], 4
      %s47 = int_to_ptr.vmem [resolvable:$true] %s46
      %52 = dma.hbm_to_vmem [thread:$0]  %s45, 256, %s47, [#allocation5], 64, 64, 4
    $region17: #{tpu_custom_call.1} parent=1 // pred_fallthru
      _
    // Predicated region
    $region18: #{tpu_custom_call.1} parent=1 // pred_check
      _
    $region19: #{tpu_custom_call.1} parent=1 // pred_check_branch
      %54 = sbr.rel (0) target = $region21
    $region20: #{tpu_custom_call.1} parent=1 // pred_region
      _
    $region21: #{tpu_custom_call.1} parent=1 // pred_fallthru
      _
    // Predicated region
    $region22: #{tpu_custom_call.1} parent=1 // pred_check
      _
    $region23: #{tpu_custom_call.1} parent=1 // pred_check_branch
      %56 = sbr.rel (0) target = $region25
    $region24: #{tpu_custom_call.1} parent=1 // pred_region
      %58 = dma.done [#allocation3], 512
    $region25: #{tpu_custom_call.1} parent=1 // pred_fallthru
      _
    // Predicated region
    $region26: #{tpu_custom_call.1} parent=1 // pred_check
      _
    $region27: #{tpu_custom_call.1} parent=1 // pred_check_branch
      %60 = sbr.rel (0) target = $region29
    $region28: #{tpu_custom_call.1} parent=1 // pred_region
      %62 = dma.done [#allocation5], 256
    $region29: #{tpu_custom_call.1} parent=1 // pred_fallthru
      _
    // Predicated region
    $region30: #{tpu_custom_call.1} parent=1 // pred_check
      _
    $region31: #{tpu_custom_call.1} parent=1 // pred_check_branch
      %64 = sbr.rel (0) target = $region33
    $region32: #{tpu_custom_call.1} parent=1 // pred_region
      %66 = dma.done [#allocation5], 256
    $region33: #{tpu_custom_call.1} parent=1 // pred_fallthru
      _
    %v68 = vld [vmem:[#allocation2] sm:$0xff]
    %v69 = vld [vmem:[#allocation2 + $0x8] sm:$0xff]
    %v70 = vld [vmem:[#allocation2 + $0x10] sm:$0xff]
    %v71 = vld [vmem:[#allocation2 + $0x18] sm:$0xff]
    %v72 = vpack.c.bf16 %v69, %v68
    %v73 = vpack.c.bf16 %v71, %v70
    %v74 = vld [vmem:[#allocation4] sm:$0xf]
    %v75 = vld [vmem:[#allocation4 + $0x4] sm:$0xf]
    %v76 = vld [vmem:[#allocation4 + $0x8] sm:$0xf]
    %v77 = vld [vmem:[#allocation4 + $0xc] sm:$0xf]
    %v78 = vld [vmem:[%s2] sm:$0x1]
    %v80 = vperm.slane %v78, 0
    %v86 = vunpack.c.l.b16 %v74
    %v87 = vunpack.c.l.b16 %v75
    %v88 = vunpack.c.l.b16 %v76
    %v89 = vunpack.c.l.b16 %v77
    %v90 = vpack.c.b16 %v87, %v86
    %v91 = vpack.c.b16 %v89, %v88
    %vm94 = vcmask 261120
    %v96 = vsel %vm94, %v72, 0
    %v99 = vsel %vm94, %v73, 0
    %101 = vmatpush.bf16.msra.mxu0 0
    %102 = vmatpush.bf16.msra.mxu0 0
    %103 = vmatpush.bf16.msra.mxu0 0
    %104 = vmatpush.bf16.msra.mxu0 0
    %105 = vmatpush.bf16.msra.mxu0 0
    %106 = vmatpush.bf16.msra.mxu0 0
    %107 = vmatpush.bf16.msra.mxu0 %v91
    %108 = vmatpush.bf16.msra.mxu0 %v90
    %109 = vmatmul.bf16.gmra.mxu0 %v96
    %v110 = vpop.f32.mrf.mxu0
    %v111 = vadd.f32 %v80, %v110
    %v112 = vpop.f32.mrf.mxu0
    %v113 = vadd.f32 %v80, %v112
    %114 = vmatmul.bf16.gmra.mxu0 %v99
    %v115 = vpop.f32.mrf.mxu0
    %v116 = vadd.f32 %v80, %v115
    %v117 = vpop.f32.mrf.mxu0
    %v118 = vadd.f32 %v80, %v117
    %119 = vdwg.mxu0
    %v120 = vtanh.pop %v111
    %v121 = vtanh.pop %v113
    %v122 = vtanh.pop %v116
    %v123 = vtanh.pop %v118
    %v124 = vpack.c.bf16 %v121, %v120
    %v125 = vpack.c.bf16 %v123, %v122
    %v126 = vld [vmem:[#allocation6] sm:$0xf]
    %v127 = vld [vmem:[#allocation6 + $0x4] sm:$0xf]
    %v128 = vld [vmem:[#allocation6 + $0x8] sm:$0xf]
    %v129 = vld [vmem:[#allocation6 + $0xc] sm:$0xf]
    %v130 = vld [vmem:[%s4] sm:$0x1]
    %v132 = vperm.slane %v130, 0
    %v138 = vunpack.c.l.b16 %v126
    %v139 = vunpack.c.l.b16 %v127
    %v140 = vunpack.c.l.b16 %v128
    %v141 = vunpack.c.l.b16 %v129
    %v142 = vpack.c.b16 %v139, %v138
    %v143 = vpack.c.b16 %v141, %v140
    %v147 = vsel %vm94, %v124, 0
    %v150 = vsel %vm94, %v125, 0
    %152 = vmatpush.bf16.msra.mxu0 0
    %153 = vmatpush.bf16.msra.mxu0 0
    %154 = vmatpush.bf16.msra.mxu0 0
    %155 = vmatpush.bf16.msra.mxu0 0
    %156 = vmatpush.bf16.msra.mxu0 0
    %157 = vmatpush.bf16.msra.mxu0 0
    %158 = vmatpush.bf16.msra.mxu0 %v143
    %159 = vmatpush.bf16.msra.mxu0 %v142
    %160 = vmatmul.bf16.gmra.mxu0 %v147
    %v161 = vpop.f32.mrf.mxu0
    %v162 = vadd.f32 %v132, %v161
    %v163 = vpop.f32.mrf.mxu0
    %v164 = vadd.f32 %v132, %v163
    %165 = vmatmul.bf16.gmra.mxu0 %v150
    %v166 = vpop.f32.mrf.mxu0
    %v167 = vadd.f32 %v132, %v166
    %v168 = vpop.f32.mrf.mxu0
    %v169 = vadd.f32 %v132, %v168
    %170 = vdwg.mxu0
    %vm171 = vcmask 15360
    %172 = vst.msk [vmem:[%s5] sm:$0xff] %vm171, %v162
    %173 = vst.msk [vmem:[%s5 + $0x8] sm:$0xff] %vm171, %v164
    %174 = vst.msk [vmem:[%s5 + $0x10] sm:$0xff] %vm171, %v167
    %175 = vst.msk [vmem:[%s5 + $0x18] sm:$0xff] %vm171, %v169
    // Predicated region
    $region34: #{tpu_custom_call.1} parent=1 // pred_check
      _
    $region35: #{tpu_custom_call.1} parent=1 // pred_check_branch
      %177 = sbr.rel (0) target = $region37
    $region36: #{tpu_custom_call.1} parent=1 // pred_region
      _
    $region37: #{tpu_custom_call.1} parent=1 // pred_fallthru
      _
    // Predicated region
    $region38: #{tpu_custom_call.1} parent=1 // pred_check
      _
    $region39: #{tpu_custom_call.1} parent=1 // pred_check_branch
      %179 = sbr.rel (0) target = $region41
    $region40: #{tpu_custom_call.1} parent=1 // pred_region
      _
    $region41: #{tpu_custom_call.1} parent=1 // pred_fallthru
      _
    %180 = vsyncpa [#allocation3], 1
    %181 = vsyncpa [#allocation5], 1

</llo_original>
